<compile_context>
chip_gen: v6e
topology: v6e:2x2x1
jax: 0.10.0
libtpu: 0.0.40
codegen_flags: <defaults>
</compile_context>

<pallas_src>
import jax
import jax.numpy as jnp
from jax.experimental import pallas as pl
from jax.experimental.pallas import tpu as pltpu


# Byte target for one (TR, L) output tile.  Steady-state double-buffered VMEM
# is ~6x this (two input halves + one output, x2 buffers) ~= 24 MiB.
_TARGET_BLOCK_BYTES = 4 << 20
# Raise scoped VMEM explicitly: buffers (~24 MiB) + elementwise temporaries,
# with headroom; below physical VMEM on every generation (v7x: 64 MiB/TC).
_VMEM_LIMIT_BYTES = 48 << 20


def _glu_kernel(x_ref, o_ref):
    # x_ref: (2, TR, L) tile -- x_ref[0] = "outputs" half, x_ref[1] = "gate".
    # o_ref: (TR, L) tile.
    o = x_ref[0].astype(jnp.float32)
    g = x_ref[1].astype(jnp.float32)
    o_ref[...] = (o * jax.nn.sigmoid(g)).astype(o_ref.dtype)


def _round_up(x: int, m: int) -> int:
    return (x + m - 1) // m * m


def _choose_geometry(e: int, itemsize: int, n_outer: int):
    """Factor a per-(outer, half) slab of `e` elements (e % 128 == 0) into
    (rows R, lanes L) and pick a row tile TR.

    Goals:
      * L a multiple of 128 (lane-dense, unmasked stores)
      * R >= the sublane multiple where possible (full-sublane vregs / DMA rows)
      * TR * L * itemsize ~= _TARGET_BLOCK_BYTES (MiB-scale streaming blocks)
      * >= 2 row tiles when outer == 1 so both v7x TensorCores get work
    """
    sub = max(8, 8 * (4 // itemsize))  # f32: 8, bf16: 16, int8/fp8: 32

    # Lane width: largest multiple of 128 dividing e (capped at 2048) that
    # still leaves >= `sub` rows; otherwise the largest divisor (tiny slabs).
    cands = [l for l in range(128, min(e, 2048) + 1, 128) if e % l == 0]
    full = [l for l in cands if (e // l) >= sub]
    lanes = max(full) if full else max(cands)
    rows = e // lanes

    # Row tile: multiple of `sub`, sized by bytes, capped by the slab.
    rows_target = max(sub, _TARGET_BLOCK_BYTES // (lanes * itemsize))
    rows_target = max(sub, rows_target // sub * sub)
    if n_outer == 1 and rows >= 2 * sub:
        # Keep at least two row tiles along a "parallel" axis (v7x megacore).
        rows_target = min(rows_target, _round_up(-(-rows // 2), sub))
    tr = min(rows, rows_target)
    if rows > sub:
        tr = max(sub, tr // sub * sub)
    return lanes, rows, tr


def glu(x: jax.Array, dim: int = 1) -> jax.Array:
    """GLU: outputs, gate = split(x, 2, axis=dim); outputs * sigmoid(gate)."""
    shape = x.shape
    if dim < 0:
        dim += x.ndim
    c = shape[dim]
    assert c % 2 == 0, "GLU split dim must be even"
    c_half = c // 2

    outer = 1
    for s in shape[:dim]:
        outer *= s
    inner = 1
    for s in shape[dim + 1:]:
        inner *= s
    e = c_half * inner
    itemsize = jnp.dtype(x.dtype).itemsize

    # Each half of the split is a contiguous slab of `e` elements per outer idx.
    x3 = x.reshape(outer, 2, e)

    # Pad to a lane multiple so every tile is lane-dense (pad / run / slice).
    e_pad = _round_up(e, 128)
    if e_pad != e:
        x3 = jnp.pad(x3, ((0, 0), (0, 0), (0, e_pad - e)))

    lanes, rows, tr = _choose_geometry(e_pad, itemsize, outer)
    x4 = x3.reshape(outer, 2, rows, lanes)
    num_r = pl.cdiv(rows, tr)

    out = pl.pallas_call(
        _glu_kernel,
        out_shape=jax.ShapeDtypeStruct((outer, rows, lanes), x.dtype),
        grid_spec=pltpu.PrefetchScalarGridSpec(
            num_scalar_prefetch=0,
            grid=(outer, num_r),
            in_specs=[
                # Both halves in one block: (1, 2, TR, L); kernel views ref[0]/[1].
                pl.BlockSpec((pl.Squeezed(), 2, tr, lanes),
                             lambda b, r: (b, 0, r, 0)),
            ],
            out_specs=pl.BlockSpec((pl.Squeezed(), tr, lanes),
                                   lambda b, r: (b, r, 0)),
        ),
        compiler_params=pltpu.CompilerParams(
            dimension_semantics=("parallel", "parallel"),
            vmem_limit_bytes=_VMEM_LIMIT_BYTES,
        ),
    )(x4)

    out = out.reshape(outer, e_pad)
    if e_pad != e:
        out = out[:, :e]
    return out.reshape(shape[:dim] + (c_half,) + shape[dim + 1:])


def _reference_glu(x: jax.Array, dim: int = 1) -> jax.Array:
    o, g = jnp.split(x, 2, axis=dim)
    return o * jax.nn.sigmoid(g)


if __name__ == "__main__":
    key = jax.random.PRNGKey(0)

    # 1) Small NCHW input matching the module's conv-style use: (2, 4, 16, 16).
    x = jax.random.normal(key, (2, 4, 16, 16), dtype=jnp.float32)
    y = glu(x, dim=1)
    jax.block_until_ready(y)
    assert y.shape == (2, 2, 16, 16)
    assert jnp.allclose(y, _reference_glu(x, 1), atol=1e-6, rtol=1e-6)

    # 2) Shape exercising the full-sublane slab + multi-row-tile (megacore) path.
    k2 = jax.random.PRNGKey(1)
    x2 = jax.random.normal(k2, (1, 16, 64, 64), dtype=jnp.float32)
    y2 = glu(x2, dim=1)
    jax.block_until_ready(y2)
    assert y2.shape == (1, 8, 64, 64)
    assert jnp.allclose(y2, _reference_glu(x2, 1), atol=1e-6, rtol=1e-6)

    # 3) Non-128-divisible spatial size -> pad / run / slice path.
    k3 = jax.random.PRNGKey(2)
    x3 = jax.random.normal(k3, (2, 6, 5, 7), dtype=jnp.float32)
    y3 = glu(x3, dim=1)
    jax.block_until_ready(y3)
    assert y3.shape == (2, 3, 5, 7)
    assert jnp.allclose(y3, _reference_glu(x3, 1), atol=1e-6, rtol=1e-6)

    print("KERNEL_OK")
</pallas_src>

<mosaic_0001>
module attributes {stable_mosaic.version = 11 : i64} {
  func.func @_glu_kernel(%arg0: i32, %arg1: i32, %arg2: memref<1x2x1x512xf32, #tpu.memory_space<vmem>>, %arg3: memref<1x1x512xf32, #tpu.memory_space<vmem>>) attributes {dimension_semantics = [#tpu.dimension_semantics<parallel>, #tpu.dimension_semantics<parallel>], iteration_bounds = array<i64: 2, 1>, scalar_prefetch = 0 : i64, scratch_operands = 0 : i64, tpu.core_type = #tpu.core_type<tc>, window_params = [{transform_indices = @transform_0, window_bounds = array<i64: 1, 2, 1, 512>}, {transform_indices = @transform_1, window_bounds = array<i64: 1, 1, 512>}]} {
    %c0 = arith.constant 0 : index
    %c0_0 = arith.constant 0 : index
    %c0_1 = arith.constant 0 : index
    %c0_2 = arith.constant 0 : index
    %0 = vector.load %arg2[%c0, %c0_0, %c0_1, %c0_2] : memref<1x2x1x512xf32, #tpu.memory_space<vmem>>, vector<1x1x1x512xf32>
    %1 = vector.shape_cast %0 : vector<1x1x1x512xf32> to vector<1x512xf32>
    %c0_3 = arith.constant 0 : index
    %c1 = arith.constant 1 : index
    %c0_4 = arith.constant 0 : index
    %c0_5 = arith.constant 0 : index
    %2 = vector.load %arg2[%c0_3, %c1, %c0_4, %c0_5] : memref<1x2x1x512xf32, #tpu.memory_space<vmem>>, vector<1x1x1x512xf32>
    %3 = vector.shape_cast %2 : vector<1x1x1x512xf32> to vector<1x512xf32>
    %4 = arith.negf %3 : vector<1x512xf32>
    %5 = math.exp %4 : vector<1x512xf32>
    %cst = arith.constant 1.000000e+00 : f32
    %6 = vector.broadcast %cst : f32 to vector<1x512xf32>
    %7 = arith.addf %6, %5 : vector<1x512xf32>
    %8 = arith.divf %6, %7 : vector<1x512xf32>
    %9 = arith.mulf %1, %8 : vector<1x512xf32>
    %c0_6 = arith.constant 0 : index
    %c0_7 = arith.constant 0 : index
    %c0_8 = arith.constant 0 : index
    %10 = vector.load %arg3[%c0_6, %c0_7, %c0_8] : memref<1x1x512xf32, #tpu.memory_space<vmem>>, vector<1x1x512xf32>
    %11 = vector.shape_cast %10 : vector<1x1x512xf32> to vector<1x512xf32>
    %12 = vector.shape_cast %9 : vector<1x512xf32> to vector<1x1x512xf32>
    tpu.vector_store %arg3[%c0_6, %c0_7, %c0_8], %12 {strides = array<i32>} : memref<1x1x512xf32, #tpu.memory_space<vmem>>, vector<1x1x512xf32>,
    return
  }
  func.func @transform_0(%arg0: i32, %arg1: i32) -> (i32, i32, i32, i32) {
    %c0_i32 = arith.constant 0 : i32
    %c0_i32_0 = arith.constant 0 : i32
    %c0_i32_1 = arith.constant 0 : i32
    return %arg0, %c0_i32, %arg1, %c0_i32_0 : i32, i32, i32, i32
  }
  func.func @transform_1(%arg0: i32, %arg1: i32) -> (i32, i32, i32) {
    %c0_i32 = arith.constant 0 : i32
    %c0_i32_0 = arith.constant 0 : i32
    return %arg0, %arg1, %c0_i32 : i32, i32, i32
  }
}

</mosaic_0001>

<llo_original>
// kernel: tpu_custom_call.1
$region0: #{tpu_custom_call.1}
  #allocation0 [shape = 'u32[]', space=smem, size = 0x4, offset = 0x4, fixed_abs, tag = 'smem constant byte address 0x4 - core index']
  #allocation1 [shape = 'u32[144,128]{1,0:T(1,128)}', space=vmem, size = 0x12000, scoped, tag = 'internal scratch']
  %s0 = inlined_call_operand.hbm [shape: f32[2,2,1,512], index: 0, kind: input, shape index: {}]
  %s1 = inlined_call_operand.hbm [shape: f32[2,1,512], index: 1, kind: output, shape index: {}]
  %s2 = sld [smem:[#allocation0]]
  $region41: #{tpu_custom_call.1} parent=0
    _
  %s4 = ssub.s32 1, %s2
  %s5 = scalar_select 0, %s4, %s2
  $region1: #{tpu_custom_call.1} parent=0
    #allocation2 [shape = 'u8[8192]{0}', space=vmem, size = 0x2000, scoped, tag = 'input window, operand 0']
    #allocation3 [shape = 's32[2]{0}', space=sflag, size = 0x8, scoped, tag = 'scoped memory for tpu_custom_call.1']
    #allocation4 [shape = 's32[2]{0}', space=sflag, size = 0x8, scoped, tag = 'scoped memory for tpu_custom_call.1']
    #allocation5 [shape = 'u8[4096]{0}', space=vmem, size = 0x1000, scoped, tag = 'output window, operand 0']
    %6 = vsyncpa [#allocation3], 0
    %s7 = scalar_lea.sflag [#allocation3], 1
    %8 = vsyncpa %s7, 0
    %9 = vsyncpa [#allocation4], 0
    %s10 = scalar_lea.sflag [#allocation4], 1
    %11 = vsyncpa %s10, 0
    loop: start=0, step=1, limit=4
    $region2: #{tpu_custom_call.1} parent=1 // loop_pre_header
      _
    $region3: #{tpu_custom_call.1} parent=1 // loop_header
      %s13 = sphi 0, %s17
      %p14 = scmp.ge.s32.totalorder %s13, 4
      %s20 = sphi 0, %s32
      %s21 = sphi 0, %s28
      %s22 = sphi 0, %s20
      %s23 = sphi 0, %s21
      %s24 = sphi 0, %s22
      %s25 = sphi 0, %s23
      %s37 = sphi 0, %s39
      %s40 = sphi 0, %s37
      %s41 = sphi 0, %s40
      %s57 = sphi 0, %s41
      %s65 = sphi 0, %s67
      %s68 = sphi 0, %s65
      %s69 = sphi 0, %s68
      %s85 = sphi 0, %s69
    $region4: #{tpu_custom_call.1} parent=1 // loop_header_branch
      %16 = sbr.rel (%p14) target = $region8
    $region5: #{tpu_custom_call.1} parent=1 // loop_body
      %s18 = ssub.s32 %s13, 1
      %s19 = ssub.s32 %s13, 2
      %s26 = sadd.s32 1, %s21
      %p27 = scmp.ge.s32.totalorder %s26, 1
      %s28 = scalar_select %p27, 0, %s26
      %s29 = sadd.s32 1, %s20
      %s30 = scalar_select %p27, %s29, %s20
      %p31 = scmp.ge.s32.totalorder %s30, 2
      %s32 = scalar_select %p31, 0, %s30
      %s33 = ssub.s32 %s20, %s32
      %s34 = ssub.s32 %s21, %s28
      %s35 = sor.u32 %s33, %s34
      %p36 = scmp.eq.s32.totalorder %s35, 0
      %s38 = sadd.s32 %s37, 1
      %s39 = scalar_select %p36, %s37, %s38
      %p42 = pneg %p36
      %p43 = scmp.eq.s32.totalorder %s13, 1
      %p44 = por %p42, %p43
      %p45 = scmp.ne.s32.totalorder %s37, %s40
      %p46 = scmp.eq.s32.totalorder %s13, 0
      %p47 = por %p45, %p46
      %p48 = scmp.ne.s32.totalorder %s37, %s40
      %p49 = scmp.eq.s32.totalorder %s18, 1
      %p50 = por %p48, %p49
      %p51 = scmp.ne.s32.totalorder %s40, %s41
      %p52 = scmp.eq.s32.totalorder %s18, 0
      %p53 = por %p51, %p52
      %p54 = scmp.ne.s32.totalorder %s40, %s41
      %p55 = scmp.eq.s32.totalorder %s19, 1
      %p56 = por %p54, %p55
      %p58 = scmp.ne.s32.totalorder %s41, %s57
      %p59 = scmp.eq.s32.totalorder %s19, 0
      %p60 = por %p58, %p59
      %s61 = ssub.s32 %s20, %s32
      %s62 = ssub.s32 %s21, %s28
      %s63 = sor.u32 %s61, %s62
      %p64 = scmp.eq.s32.totalorder %s63, 0
      %s66 = sadd.s32 %s65, 1
      %s67 = scalar_select %p64, %s65, %s66
      %p70 = pneg %p64
      %p71 = scmp.eq.s32.totalorder %s13, 1
      %p72 = por %p70, %p71
      %p73 = scmp.ne.s32.totalorder %s65, %s68
      %p74 = scmp.eq.s32.totalorder %s13, 0
      %p75 = por %p73, %p74
      %p76 = scmp.ne.s32.totalorder %s65, %s68
      %p77 = scmp.eq.s32.totalorder %s18, 1
      %p78 = por %p76, %p77
      %p79 = scmp.ne.s32.totalorder %s68, %s69
      %p80 = scmp.eq.s32.totalorder %s18, 0
      %p81 = por %p79, %p80
      %p82 = scmp.ne.s32.totalorder %s68, %s69
      %p83 = scmp.eq.s32.totalorder %s19, 1
      %p84 = por %p82, %p83
      %p86 = scmp.ne.s32.totalorder %s69, %s85
      %p87 = scmp.eq.s32.totalorder %s19, 0
      %p88 = por %p86, %p87
      %p89 = scmp.le.s32.totalorder 1, %s13
      %p90 = scmp.lt.s32.totalorder %s13, 3
      %p91 = pnand %p89, %p90
      %p92 = pneg %p91
      // Predicated region
      $region9: #{tpu_custom_call.1} parent=5 // pred_check
        _
      $region10: #{tpu_custom_call.1} parent=5 // pred_check_branch
        %94 = sbr.rel (%p91) target = $region12
      $region11: #{tpu_custom_call.1} parent=5 // pred_region
        %s95 = ssub.s32 %s13, 1
      $region12: #{tpu_custom_call.1} parent=5 // pred_fallthru
        _
      %p96 = scmp.lt.s32.totalorder %s13, 2
      // Predicated region
      $region13: #{tpu_custom_call.1} parent=5 // pred_check
        %p97 = pneg %p96
      $region14: #{tpu_custom_call.1} parent=5 // pred_check_branch
        %99 = sbr.rel (%p97) target = $region16
      $region15: #{tpu_custom_call.1} parent=5 // pred_region
        // Predicated region
        $region17: #{tpu_custom_call.1} parent=15 // pred_check
          %p100 = pneg %p47
        $region18: #{tpu_custom_call.1} parent=15 // pred_check_branch
          %102 = sbr.rel (%p100) target = $region20
        $region19: #{tpu_custom_call.1} parent=15 // pred_region
          %s103 = sand.u32 %s37, 1
          %s104 = scalar_lea.sflag [#allocation3], %s103
          %s105 = sand.u32 %s37, 1
          %s106 = smul.addr %s105, 8
          %s107 = scalar_lea.vmem [#allocation2], %s106
          %s109 = ssub.s32 128, 128
          %110 = vsyncadd %s104, %s109
          %s111 = smul.addr %s21, 4
          %s112 = smul.addr %s20, 8
          %s113 = sadd.s32 %s111, %s112
          %s114 = smul.addr %s113, 16
          %s115 = scalar_lea.hbm %s0, %s114
          %s116 = sshll.u32 %s107, 4
          %s117 = int_to_ptr.vmem [resolvable:$true] %s116
          %122 = dma.hbm_to_vmem [thread:$0]  %s115, 128, %s117, %s104, 64, 64, 4
        $region20: #{tpu_custom_call.1} parent=15 // pred_fallthru
          _
      $region16: #{tpu_custom_call.1} parent=5 // pred_fallthru
        _
      %p123 = scmp.le.s32.totalorder 1, %s13
      %p124 = scmp.lt.s32.totalorder %s13, 3
      %p125 = pnand %p123, %p124
      %p126 = pneg %p125
      // Predicated region
      $region21: #{tpu_custom_call.1} parent=5 // pred_check
        _
      $region22: #{tpu_custom_call.1} parent=5 // pred_check_branch
        %128 = sbr.rel (%p125) target = $region24
      $region23: #{tpu_custom_call.1} parent=5 // pred_region
        %s129 = ssub.s32 %s13, 1
        %s130 = sand.u32 %s40, 1
        %s131 = scalar_lea.sflag [#allocation3], %s130
        %s132 = sand.u32 %s40, 1
        %s133 = smul.addr %s132, 8
        %s134 = scalar_lea.vmem [#allocation2], %s133
        // Predicated region
        $region25: #{tpu_custom_call.1} parent=23 // pred_check
          %p135 = pneg %p53
        $region26: #{tpu_custom_call.1} parent=23 // pred_check_branch
          %137 = sbr.rel (%p135) target = $region28
        $region27: #{tpu_custom_call.1} parent=23 // pred_region
          %138 = dma.done %s131, 128
        $region28: #{tpu_custom_call.1} parent=23 // pred_fallthru
          _
        %s139 = sand.u32 %s40, 1
        %s140 = scalar_lea.sflag [#allocation3], %s139
        %s141 = sand.u32 %s40, 1
        %s142 = smul.addr %s141, 8
        %s143 = scalar_lea.vmem [#allocation2], %s142
        %p144 = pneg %p53
        %p145 = pneg %p50
        %p146 = pneg %p81
        %p147 = pneg %p78
        %s148 = sand.u32 %s68, 1
        %s149 = scalar_lea.sflag [#allocation4], %s148
        %s150 = sand.u32 %s68, 1
        %s151 = smul.addr %s150, 4
        %s152 = scalar_lea.vmem [#allocation5], %s151
        %v153 = vld [vmem:[%s134] sm:$0xf]
        %s154 = scalar_lea.vmem %s134, 4 [#allocation2]
        %v155 = vld [vmem:[%s154] sm:$0xf]
        %v156 = vxor.u32 %v155, 2147483648
        %v157 = vmul.f32 %v156, 1.442695
        %v158 = vpow.pop %v157
        %v159 = vadd.f32 %v158, 1.0
        %v160 = vrcp.pop %v159
        %v161 = vmul.f32 1.0, %v160
        %v162 = vmul.f32 %v153, %v161
        %v163 = vlaneseq
        %vm164 = vcmp.ge.s32.totalorder %v163, 0
        %vm165 = vcmp.lt.s32.totalorder %v163, 512
        %vm166 = vmand %vm164, %vm165
        %167 = vst.msk [vmem:[%s152] sm:$0xf] %vm166, %v162
        %s168 = sand.u32 %s68, 1
        %s169 = scalar_lea.sflag [#allocation4], %s168
        %s170 = sand.u32 %s68, 1
        %s171 = smul.addr %s170, 4
        %s172 = scalar_lea.vmem [#allocation5], %s171
        // Predicated region
        $region29: #{tpu_custom_call.1} parent=23 // pred_check
          %p173 = pneg %p78
        $region30: #{tpu_custom_call.1} parent=23 // pred_check_branch
          %175 = sbr.rel (%p173) target = $region32
        $region31: #{tpu_custom_call.1} parent=23 // pred_region
          %s177 = ssub.s32 64, 64
          %178 = vsyncadd %s169, %s177
          %s179 = smul.addr %s23, 4
          %s180 = smul.addr %s22, 4
          %s181 = sadd.s32 %s179, %s180
          %s182 = smul.addr %s181, 16
          %s183 = scalar_lea.hbm %s1, %s182
          %s185 = sshll.u32 %s172, 4
          %s186 = int_to_ptr.vmem [resolvable:$true] %s185
          %188 = dma.vmem_to_hbm [thread:$0]  %s186, 64, %s183, %s169
        $region32: #{tpu_custom_call.1} parent=23 // pred_fallthru
          _
      $region24: #{tpu_custom_call.1} parent=5 // pred_fallthru
        _
      %p189 = scmp.le.s32.totalorder 2, %s13
      // Predicated region
      $region33: #{tpu_custom_call.1} parent=5 // pred_check
        %p190 = pneg %p189
      $region34: #{tpu_custom_call.1} parent=5 // pred_check_branch
        %192 = sbr.rel (%p190) target = $region36
      $region35: #{tpu_custom_call.1} parent=5 // pred_region
        %s193 = ssub.s32 %s13, 2
        // Predicated region
        $region37: #{tpu_custom_call.1} parent=35 // pred_check
          %p194 = pneg %p84
        $region38: #{tpu_custom_call.1} parent=35 // pred_check_branch
          %196 = sbr.rel (%p194) target = $region40
        $region39: #{tpu_custom_call.1} parent=35 // pred_region
          %s197 = sand.u32 %s69, 1
          %s198 = scalar_lea.sflag [#allocation4], %s197
          %s199 = sand.u32 %s69, 1
          %s200 = smul.addr %s199, 4
          %s201 = scalar_lea.vmem [#allocation5], %s200
          %202 = dma.done %s198, 64
        $region40: #{tpu_custom_call.1} parent=35 // pred_fallthru
          _
      $region36: #{tpu_custom_call.1} parent=5 // pred_fallthru
        _
    $region6: #{tpu_custom_call.1} parent=1 // loop_footer
      %s17 = sadd.s32 1, %s13
    $region7: #{tpu_custom_call.1} parent=1 // loop_footer_branch
      %12 = sbr.rel target = $region3
    $region8: #{tpu_custom_call.1} parent=1 // loop_exit
      _
    %203 = vsyncpa [#allocation3], 1
    %s204 = scalar_lea.sflag [#allocation3], 1
    %205 = vsyncpa %s204, 1
    %206 = vsyncpa [#allocation4], 1
    %s207 = scalar_lea.sflag [#allocation4], 1
    %208 = vsyncpa %s207, 1

</llo_original>
